<compile_context>
chip_gen: v7x
topology: tpu7x:2x2x1
jax: 0.10.0
libtpu: 0.0.40
codegen_flags: <defaults>
</compile_context>

<pallas_src>
import jax
import jax.numpy as jnp
import numpy as np
from jax.experimental import pallas as pl
from jax.experimental.pallas import tpu as pltpu

K = 15      # kernel_size
PAD = 7     # padding
EPS = 1e-5  # BatchNorm eps (PyTorch default)


# --------------------------- fused Pallas kernel ------------------------------
def _make_kernel(N, C, L, KC_PAD):
    NL = N * L
    inv_cnt = 1.0 / float(NL)

    def kernel(win1_ref, w1_ref, w2_ref, g1_ref, b1_ref, g2_ref, b2_ref,
               res_ref, out_ref):
        # win1_ref : (KC_PAD, N*L) bf16  im2col of x (built wrapper-side, zero-padded rows)
        # w1/w2    : (C, KC_PAD)   bf16  flattened conv weights (zero-padded cols)
        # g*/b*    : (C, 1)        f32   BN gamma / beta
        # res_ref  : (C, N*L)      f32   identity residual
        # out_ref  : (C, N*L)      f32

        # ---- conv1: one deep, lane-dense MXU matmul, f32 accumulation
        a1 = jnp.dot(w1_ref[...], win1_ref[...],
                     preferred_element_type=jnp.float32)           # (C, NL) f32
        mean1 = jnp.sum(a1, axis=1, keepdims=True) * inv_cnt
        d1 = a1 - mean1
        var1 = jnp.sum(d1 * d1, axis=1, keepdims=True) * inv_cnt   # two-pass var
        s1 = jax.lax.rsqrt(var1 + EPS) * g1_ref[...]               # folded scale
        h = jnp.maximum(d1 * s1 + b1_ref[...], 0.0)                # (C, NL) f32

        # ---- in-kernel im2col for conv2: K static lane shifts of h, masked at
        #      per-sequence boundaries (column j = n*L + l; tap k reads l + k - PAD).
        col = jax.lax.broadcasted_iota(jnp.int32, (C, NL), 1)
        l_idx = col % L
        slabs = []
        for k in range(K):
            off = k - PAD
            if off == 0:
                shifted = h
            elif off > 0:
                shifted = jnp.concatenate(
                    [h[:, off:], jnp.zeros((C, off), jnp.float32)], axis=1)
            else:
                shifted = jnp.concatenate(
                    [jnp.zeros((C, -off), jnp.float32), h[:, :NL + off]],
                    axis=1)
            lk = l_idx + off
            valid = jnp.logical_and(lk >= 0, lk < L)
            slabs.append(jnp.where(valid, shifted, 0.0))
        if KC_PAD > K * C:  # zero rows so the padded contraction adds nothing
            slabs.append(jnp.zeros((KC_PAD - K * C, NL), jnp.float32))
        win2 = jnp.concatenate(slabs, axis=0).astype(jnp.bfloat16)  # (KC_PAD, NL)

        # ---- conv2 -> bn2 -> +residual -> relu
        a2 = jnp.dot(w2_ref[...], win2, preferred_element_type=jnp.float32)
        mean2 = jnp.sum(a2, axis=1, keepdims=True) * inv_cnt
        d2 = a2 - mean2
        var2 = jnp.sum(d2 * d2, axis=1, keepdims=True) * inv_cnt
        s2 = jax.lax.rsqrt(var2 + EPS) * g2_ref[...]
        o = d2 * s2 + b2_ref[...] + res_ref[...]
        out_ref[...] = jnp.maximum(o, 0.0)

    return kernel


# --------------------------- wrapper ------------------------------------------
def basic_block_forward(x_ncl, params):
    """x_ncl: (N, C, L) float32, PyTorch layout. Returns (N, C, L) float32."""
    N, C, L = x_ncl.shape
    KC = K * C
    KC_PAD = ((KC + 127) // 128) * 128          # pad contraction to 128 lanes
    NL = N * L

    x_cnl = jnp.transpose(x_ncl, (1, 0, 2)).astype(jnp.float32)     # (C, N, L)

    # wrapper-side im2col for conv1: K static slices + concat (no gather).
    # row (k*C + i), col (n*L + l) = xpad[i, n, l + k]
    xpad = jnp.pad(x_cnl, ((0, 0), (0, 0), (PAD, PAD)))
    win1 = jnp.concatenate(
        [xpad[:, :, k:k + L].reshape(C, NL) for k in range(K)], axis=0)
    win1 = jnp.pad(win1, ((0, KC_PAD - KC), (0, 0))).astype(jnp.bfloat16)

    def flat_w(w):  # (O, I, K) -> (O, K*I) with column index k*C + i, pad cols
        wf = jnp.transpose(w, (0, 2, 1)).reshape(C, KC)
        return jnp.pad(wf, ((0, 0), (0, KC_PAD - KC))).astype(jnp.bfloat16)

    w1 = flat_w(params["conv1_w"])
    w2 = flat_w(params["conv2_w"])
    g1 = params["bn1_gamma"].reshape(C, 1).astype(jnp.float32)
    b1 = params["bn1_beta"].reshape(C, 1).astype(jnp.float32)
    g2 = params["bn2_gamma"].reshape(C, 1).astype(jnp.float32)
    b2 = params["bn2_beta"].reshape(C, 1).astype(jnp.float32)
    res = x_cnl.reshape(C, NL)                                      # (C, N*L) f32

    vmem = pl.BlockSpec(memory_space=pltpu.MemorySpace.VMEM)
    out = pl.pallas_call(
        _make_kernel(N, C, L, KC_PAD),
        out_shape=jax.ShapeDtypeStruct((C, NL), jnp.float32),
        in_specs=[vmem] * 8,
        out_specs=vmem,
        compiler_params=pltpu.CompilerParams(
            vmem_limit_bytes=32 * 1024 * 1024),     # v5e scoped default is 16 MiB
    )(win1, w1, w2, g1, b1, g2, b2, res)

    return jnp.transpose(out.reshape(C, N, L), (1, 0, 2))           # (N, C, L)


# ----------------------- pure-JAX reference (for checking) -------------------
def reference_forward(x_ncl, params):
    def conv1d(x, w):  # x: (N, C, L), w: (O, I, K)
        return jax.lax.conv_general_dilated(
            x, w, window_strides=(1,), padding=[(PAD, PAD)],
            dimension_numbers=("NCH", "OIH", "NCH"))

    def bn(x, gamma, beta):  # training-mode batch norm over (N, L)
        mean = jnp.mean(x, axis=(0, 2), keepdims=True)
        var = jnp.mean((x - mean) ** 2, axis=(0, 2), keepdims=True)
        return ((x - mean) * jax.lax.rsqrt(var + EPS)
                * gamma.reshape(1, -1, 1) + beta.reshape(1, -1, 1))

    out = conv1d(x_ncl, params["conv1_w"])
    out = jnp.maximum(bn(out, params["bn1_gamma"], params["bn1_beta"]), 0.0)
    out = conv1d(out, params["conv2_w"])
    out = bn(out, params["bn2_gamma"], params["bn2_beta"])
    out = out + x_ncl                    # downsample=None, stride=1
    return jnp.maximum(out, 0.0)


if __name__ == "__main__":
    key = jax.random.PRNGKey(0)
    N, C, L = 2, 8, 64   # inplanes == planes so the identity residual is valid
    ks = jax.random.split(key, 7)

    x = jax.random.normal(ks[0], (N, C, L), jnp.float32)
    params = {
        "conv1_w": 0.1 * jax.random.normal(ks[1], (C, C, K), jnp.float32),
        "conv2_w": 0.1 * jax.random.normal(ks[2], (C, C, K), jnp.float32),
        "bn1_gamma": 1.0 + 0.1 * jax.random.normal(ks[3], (C,), jnp.float32),
        "bn1_beta": 0.1 * jax.random.normal(ks[4], (C,), jnp.float32),
        "bn2_gamma": 1.0 + 0.1 * jax.random.normal(ks[5], (C,), jnp.float32),
        "bn2_beta": 0.1 * jax.random.normal(ks[6], (C,), jnp.float32),
    }

    fwd = jax.jit(basic_block_forward)
    out = jax.block_until_ready(fwd(x, params))
    ref = jax.block_until_ready(reference_forward(x, params))

    assert out.shape == (N, C, L) and out.dtype == jnp.float32
    np.testing.assert_allclose(np.asarray(out), np.asarray(ref), atol=5e-2, rtol=5e-2)
    print("KERNEL_OK")
</pallas_src>

<mosaic_0001>
module attributes {stable_mosaic.version = 11 : i64} {
  func.func @kernel(%arg0: memref<128x128xbf16, #tpu.memory_space<vmem>>, %arg1: memref<8x128xbf16, #tpu.memory_space<vmem>>, %arg2: memref<8x128xbf16, #tpu.memory_space<vmem>>, %arg3: memref<8x1xf32, #tpu.memory_space<vmem>>, %arg4: memref<8x1xf32, #tpu.memory_space<vmem>>, %arg5: memref<8x1xf32, #tpu.memory_space<vmem>>, %arg6: memref<8x1xf32, #tpu.memory_space<vmem>>, %arg7: memref<8x128xf32, #tpu.memory_space<vmem>>, %arg8: memref<8x128xf32, #tpu.memory_space<vmem>>) attributes {dimension_semantics = [], scalar_prefetch = 0 : i64, scratch_operands = 0 : i64, tpu.core_type = #tpu.core_type<tc>} {
    %c0 = arith.constant 0 : index
    %c0_0 = arith.constant 0 : index
    %0 = vector.load %arg1[%c0, %c0_0] : memref<8x128xbf16, #tpu.memory_space<vmem>>, vector<8x128xbf16>
    %c0_1 = arith.constant 0 : index
    %c0_2 = arith.constant 0 : index
    %1 = vector.load %arg0[%c0_1, %c0_2] : memref<128x128xbf16, #tpu.memory_space<vmem>>, vector<128x128xbf16>
    %cst = arith.constant dense<0.000000e+00> : vector<8x128xf32>
    %2 = tpu.matmul %0, %1, %cst {dimension_numbers = #tpu.dot_dimension_numbers<[1], [0], [0], [1], [0, 0, 1, 1], [], []>} : vector<8x128xbf16>, vector<128x128xbf16>, vector<8x128xf32> -> vector<8x128xf32>
    %cst_3 = arith.constant dense<0.000000e+00> : vector<8xf32>
    %3 = vector.multi_reduction <add>, %2, %cst_3 [1] : vector<8x128xf32> to vector<8xf32>
    %4 = vector.shape_cast %3 : vector<8xf32> to vector<8x1xf32>
    %cst_4 = arith.constant 7.812500e-03 : f32
    %5 = vector.broadcast %cst_4 : f32 to vector<8x1xf32>
    %6 = arith.mulf %4, %5 : vector<8x1xf32>
    %7 = vector.broadcast %6 : vector<8x1xf32> to vector<8x128xf32>
    %8 = arith.subf %2, %7 : vector<8x128xf32>
    %9 = arith.mulf %8, %8 : vector<8x128xf32>
    %cst_5 = arith.constant dense<0.000000e+00> : vector<8xf32>
    %10 = vector.multi_reduction <add>, %9, %cst_5 [1] : vector<8x128xf32> to vector<8xf32>
    %11 = vector.shape_cast %10 : vector<8xf32> to vector<8x1xf32>
    %cst_6 = arith.constant 7.812500e-03 : f32
    %12 = vector.broadcast %cst_6 : f32 to vector<8x1xf32>
    %13 = arith.mulf %11, %12 : vector<8x1xf32>
    %cst_7 = arith.constant 9.99999974E-6 : f32
    %14 = vector.broadcast %cst_7 : f32 to vector<8x1xf32>
    %15 = arith.addf %13, %14 : vector<8x1xf32>
    %16 = math.rsqrt %15 : vector<8x1xf32>
    %c0_8 = arith.constant 0 : index
    %c0_9 = arith.constant 0 : index
    %17 = vector.load %arg3[%c0_8, %c0_9] : memref<8x1xf32, #tpu.memory_space<vmem>>, vector<8x1xf32>
    %18 = arith.mulf %16, %17 : vector<8x1xf32>
    %19 = vector.broadcast %18 : vector<8x1xf32> to vector<8x128xf32>
    %20 = arith.mulf %8, %19 : vector<8x128xf32>
    %c0_10 = arith.constant 0 : index
    %c0_11 = arith.constant 0 : index
    %21 = vector.load %arg4[%c0_10, %c0_11] : memref<8x1xf32, #tpu.memory_space<vmem>>, vector<8x1xf32>
    %22 = vector.broadcast %21 : vector<8x1xf32> to vector<8x128xf32>
    %23 = arith.addf %20, %22 : vector<8x128xf32>
    %cst_12 = arith.constant 0.000000e+00 : f32
    %24 = vector.broadcast %cst_12 : f32 to vector<8x128xf32>
    %25 = arith.maximumf %23, %24 : vector<8x128xf32>
    %26 = tpu.iota {dimensions = array<i32: 1>} : vector<8x128xi32>
    %c64_i32 = arith.constant 64 : i32
    %c0_i32 = arith.constant 0 : i32
    %27 = arith.cmpi eq, %c64_i32, %c0_i32 : i32
    %c1_i32 = arith.constant 1 : i32
    %28 = arith.select %27, %c1_i32, %c64_i32 : i32
    %29 = vector.broadcast %28 : i32 to vector<8x128xi32>
    %30 = arith.remsi %26, %29 : vector<8x128xi32>
    %c0_i32_13 = arith.constant 0 : i32
    %31 = vector.broadcast %c0_i32_13 : i32 to vector<8x128xi32>
    %32 = arith.cmpi ne, %30, %31 : vector<8x128xi32>
    %c0_i32_14 = arith.constant 0 : i32
    %33 = vector.broadcast %c0_i32_14 : i32 to vector<8x128xi32>
    %34 = arith.cmpi slt, %30, %33 : vector<8x128xi32>
    %c0_i32_15 = arith.constant 0 : i32
    %35 = arith.cmpi slt, %28, %c0_i32_15 : i32
    %36 = vector.broadcast %35 : i1 to vector<8x128xi1>
    %37 = vector.broadcast %36 : vector<8x128xi1> to vector<8x128xi1>
    %38 = arith.xori %34, %37 : vector<8x128xi1>
    %39 = arith.andi %38, %32 : vector<8x128xi1>
    %40 = vector.broadcast %28 : i32 to vector<8x128xi32>
    %41 = arith.addi %30, %40 : vector<8x128xi32>
    %42 = arith.select %39, %41, %30 : vector<8x128xi1>, vector<8x128xi32>
    %cst_16 = arith.constant 0.000000e+00 : f32
    %43 = vector.broadcast %cst_16 : f32 to vector<8x7xf32>
    %44 = vector.extract_strided_slice %25 {offsets = [0, 0], sizes = [8, 121], strides = [1, 1]} : vector<8x128xf32> to vector<8x121xf32>
    %45 = tpu.concatenate %43, %44 in 1 : vector<8x7xf32>, vector<8x121xf32> -> vector<8x128xf32>
    %c-7_i32 = arith.constant -7 : i32
    %46 = vector.broadcast %c-7_i32 : i32 to vector<8x128xi32>
    %47 = arith.addi %42, %46 : vector<8x128xi32>
    %c0_i32_17 = arith.constant 0 : i32
    %48 = vector.broadcast %c0_i32_17 : i32 to vector<8x128xi32>
    %49 = arith.cmpi sge, %47, %48 : vector<8x128xi32>
    %c64_i32_18 = arith.constant 64 : i32
    %50 = vector.broadcast %c64_i32_18 : i32 to vector<8x128xi32>
    %51 = arith.cmpi slt, %47, %50 : vector<8x128xi32>
    %52 = arith.andi %49, %51 : vector<8x128xi1>
    %cst_19 = arith.constant 0.000000e+00 : f32
    %53 = vector.broadcast %cst_19 : f32 to vector<8x128xf32>
    %54 = arith.select %52, %45, %53 : vector<8x128xi1>, vector<8x128xf32>
    %cst_20 = arith.constant 0.000000e+00 : f32
    %55 = vector.broadcast %cst_20 : f32 to vector<8x6xf32>
    %56 = vector.extract_strided_slice %25 {offsets = [0, 0], sizes = [8, 122], strides = [1, 1]} : vector<8x128xf32> to vector<8x122xf32>
    %57 = tpu.concatenate %55, %56 in 1 : vector<8x6xf32>, vector<8x122xf32> -> vector<8x128xf32>
    %c-6_i32 = arith.constant -6 : i32
    %58 = vector.broadcast %c-6_i32 : i32 to vector<8x128xi32>
    %59 = arith.addi %42, %58 : vector<8x128xi32>
    %c0_i32_21 = arith.constant 0 : i32
    %60 = vector.broadcast %c0_i32_21 : i32 to vector<8x128xi32>
    %61 = arith.cmpi sge, %59, %60 : vector<8x128xi32>
    %c64_i32_22 = arith.constant 64 : i32
    %62 = vector.broadcast %c64_i32_22 : i32 to vector<8x128xi32>
    %63 = arith.cmpi slt, %59, %62 : vector<8x128xi32>
    %64 = arith.andi %61, %63 : vector<8x128xi1>
    %cst_23 = arith.constant 0.000000e+00 : f32
    %65 = vector.broadcast %cst_23 : f32 to vector<8x128xf32>
    %66 = arith.select %64, %57, %65 : vector<8x128xi1>, vector<8x128xf32>
    %cst_24 = arith.constant 0.000000e+00 : f32
    %67 = vector.broadcast %cst_24 : f32 to vector<8x5xf32>
    %68 = vector.extract_strided_slice %25 {offsets = [0, 0], sizes = [8, 123], strides = [1, 1]} : vector<8x128xf32> to vector<8x123xf32>
    %69 = tpu.concatenate %67, %68 in 1 : vector<8x5xf32>, vector<8x123xf32> -> vector<8x128xf32>
    %c-5_i32 = arith.constant -5 : i32
    %70 = vector.broadcast %c-5_i32 : i32 to vector<8x128xi32>
    %71 = arith.addi %42, %70 : vector<8x128xi32>
    %c0_i32_25 = arith.constant 0 : i32
    %72 = vector.broadcast %c0_i32_25 : i32 to vector<8x128xi32>
    %73 = arith.cmpi sge, %71, %72 : vector<8x128xi32>
    %c64_i32_26 = arith.constant 64 : i32
    %74 = vector.broadcast %c64_i32_26 : i32 to vector<8x128xi32>
    %75 = arith.cmpi slt, %71, %74 : vector<8x128xi32>
    %76 = arith.andi %73, %75 : vector<8x128xi1>
    %cst_27 = arith.constant 0.000000e+00 : f32
    %77 = vector.broadcast %cst_27 : f32 to vector<8x128xf32>
    %78 = arith.select %76, %69, %77 : vector<8x128xi1>, vector<8x128xf32>
    %cst_28 = arith.constant 0.000000e+00 : f32
    %79 = vector.broadcast %cst_28 : f32 to vector<8x4xf32>
    %80 = vector.extract_strided_slice %25 {offsets = [0, 0], sizes = [8, 124], strides = [1, 1]} : vector<8x128xf32> to vector<8x124xf32>
    %81 = tpu.concatenate %79, %80 in 1 : vector<8x4xf32>, vector<8x124xf32> -> vector<8x128xf32>
    %c-4_i32 = arith.constant -4 : i32
    %82 = vector.broadcast %c-4_i32 : i32 to vector<8x128xi32>
    %83 = arith.addi %42, %82 : vector<8x128xi32>
    %c0_i32_29 = arith.constant 0 : i32
    %84 = vector.broadcast %c0_i32_29 : i32 to vector<8x128xi32>
    %85 = arith.cmpi sge, %83, %84 : vector<8x128xi32>
    %c64_i32_30 = arith.constant 64 : i32
    %86 = vector.broadcast %c64_i32_30 : i32 to vector<8x128xi32>
    %87 = arith.cmpi slt, %83, %86 : vector<8x128xi32>
    %88 = arith.andi %85, %87 : vector<8x128xi1>
    %cst_31 = arith.constant 0.000000e+00 : f32
    %89 = vector.broadcast %cst_31 : f32 to vector<8x128xf32>
    %90 = arith.select %88, %81, %89 : vector<8x128xi1>, vector<8x128xf32>
    %cst_32 = arith.constant 0.000000e+00 : f32
    %91 = vector.broadcast %cst_32 : f32 to vector<8x3xf32>
    %92 = vector.extract_strided_slice %25 {offsets = [0, 0], sizes = [8, 125], strides = [1, 1]} : vector<8x128xf32> to vector<8x125xf32>
    %93 = tpu.concatenate %91, %92 in 1 : vector<8x3xf32>, vector<8x125xf32> -> vector<8x128xf32>
    %c-3_i32 = arith.constant -3 : i32
    %94 = vector.broadcast %c-3_i32 : i32 to vector<8x128xi32>
    %95 = arith.addi %42, %94 : vector<8x128xi32>
    %c0_i32_33 = arith.constant 0 : i32
    %96 = vector.broadcast %c0_i32_33 : i32 to vector<8x128xi32>
    %97 = arith.cmpi sge, %95, %96 : vector<8x128xi32>
    %c64_i32_34 = arith.constant 64 : i32
    %98 = vector.broadcast %c64_i32_34 : i32 to vector<8x128xi32>
    %99 = arith.cmpi slt, %95, %98 : vector<8x128xi32>
    %100 = arith.andi %97, %99 : vector<8x128xi1>
    %cst_35 = arith.constant 0.000000e+00 : f32
    %101 = vector.broadcast %cst_35 : f32 to vector<8x128xf32>
    %102 = arith.select %100, %93, %101 : vector<8x128xi1>, vector<8x128xf32>
    %cst_36 = arith.constant 0.000000e+00 : f32
    %103 = vector.broadcast %cst_36 : f32 to vector<8x2xf32>
    %104 = vector.extract_strided_slice %25 {offsets = [0, 0], sizes = [8, 126], strides = [1, 1]} : vector<8x128xf32> to vector<8x126xf32>
    %105 = tpu.concatenate %103, %104 in 1 : vector<8x2xf32>, vector<8x126xf32> -> vector<8x128xf32>
    %c-2_i32 = arith.constant -2 : i32
    %106 = vector.broadcast %c-2_i32 : i32 to vector<8x128xi32>
    %107 = arith.addi %42, %106 : vector<8x128xi32>
    %c0_i32_37 = arith.constant 0 : i32
    %108 = vector.broadcast %c0_i32_37 : i32 to vector<8x128xi32>
    %109 = arith.cmpi sge, %107, %108 : vector<8x128xi32>
    %c64_i32_38 = arith.constant 64 : i32
    %110 = vector.broadcast %c64_i32_38 : i32 to vector<8x128xi32>
    %111 = arith.cmpi slt, %107, %110 : vector<8x128xi32>
    %112 = arith.andi %109, %111 : vector<8x128xi1>
    %cst_39 = arith.constant 0.000000e+00 : f32
    %113 = vector.broadcast %cst_39 : f32 to vector<8x128xf32>
    %114 = arith.select %112, %105, %113 : vector<8x128xi1>, vector<8x128xf32>
    %cst_40 = arith.constant 0.000000e+00 : f32
    %115 = vector.broadcast %cst_40 : f32 to vector<8x1xf32>
    %116 = vector.extract_strided_slice %25 {offsets = [0, 0], sizes = [8, 127], strides = [1, 1]} : vector<8x128xf32> to vector<8x127xf32>
    %117 = tpu.concatenate %115, %116 in 1 : vector<8x1xf32>, vector<8x127xf32> -> vector<8x128xf32>
    %c-1_i32 = arith.constant -1 : i32
    %118 = vector.broadcast %c-1_i32 : i32 to vector<8x128xi32>
    %119 = arith.addi %42, %118 : vector<8x128xi32>
    %c0_i32_41 = arith.constant 0 : i32
    %120 = vector.broadcast %c0_i32_41 : i32 to vector<8x128xi32>
    %121 = arith.cmpi sge, %119, %120 : vector<8x128xi32>
    %c64_i32_42 = arith.constant 64 : i32
    %122 = vector.broadcast %c64_i32_42 : i32 to vector<8x128xi32>
    %123 = arith.cmpi slt, %119, %122 : vector<8x128xi32>
    %124 = arith.andi %121, %123 : vector<8x128xi1>
    %cst_43 = arith.constant 0.000000e+00 : f32
    %125 = vector.broadcast %cst_43 : f32 to vector<8x128xf32>
    %126 = arith.select %124, %117, %125 : vector<8x128xi1>, vector<8x128xf32>
    %c0_i32_44 = arith.constant 0 : i32
    %127 = vector.broadcast %c0_i32_44 : i32 to vector<8x128xi32>
    %128 = arith.addi %42, %127 : vector<8x128xi32>
    %c0_i32_45 = arith.constant 0 : i32
    %129 = vector.broadcast %c0_i32_45 : i32 to vector<8x128xi32>
    %130 = arith.cmpi sge, %128, %129 : vector<8x128xi32>
    %c64_i32_46 = arith.constant 64 : i32
    %131 = vector.broadcast %c64_i32_46 : i32 to vector<8x128xi32>
    %132 = arith.cmpi slt, %128, %131 : vector<8x128xi32>
    %133 = arith.andi %130, %132 : vector<8x128xi1>
    %cst_47 = arith.constant 0.000000e+00 : f32
    %134 = vector.broadcast %cst_47 : f32 to vector<8x128xf32>
    %135 = arith.select %133, %25, %134 : vector<8x128xi1>, vector<8x128xf32>
    %136 = vector.extract_strided_slice %25 {offsets = [0, 1], sizes = [8, 127], strides = [1, 1]} : vector<8x128xf32> to vector<8x127xf32>
    %cst_48 = arith.constant 0.000000e+00 : f32
    %137 = vector.broadcast %cst_48 : f32 to vector<8x1xf32>
    %138 = tpu.concatenate %136, %137 in 1 : vector<8x127xf32>, vector<8x1xf32> -> vector<8x128xf32>
    %c1_i32_49 = arith.constant 1 : i32
    %139 = vector.broadcast %c1_i32_49 : i32 to vector<8x128xi32>
    %140 = arith.addi %42, %139 : vector<8x128xi32>
    %c0_i32_50 = arith.constant 0 : i32
    %141 = vector.broadcast %c0_i32_50 : i32 to vector<8x128xi32>
    %142 = arith.cmpi sge, %140, %141 : vector<8x128xi32>
    %c64_i32_51 = arith.constant 64 : i32
    %143 = vector.broadcast %c64_i32_51 : i32 to vector<8x128xi32>
    %144 = arith.cmpi slt, %140, %143 : vector<8x128xi32>
    %145 = arith.andi %142, %144 : vector<8x128xi1>
    %cst_52 = arith.constant 0.000000e+00 : f32
    %146 = vector.broadcast %cst_52 : f32 to vector<8x128xf32>
    %147 = arith.select %145, %138, %146 : vector<8x128xi1>, vector<8x128xf32>
    %148 = vector.extract_strided_slice %25 {offsets = [0, 2], sizes = [8, 126], strides = [1, 1]} : vector<8x128xf32> to vector<8x126xf32>
    %cst_53 = arith.constant 0.000000e+00 : f32
    %149 = vector.broadcast %cst_53 : f32 to vector<8x2xf32>
    %150 = tpu.concatenate %148, %149 in 1 : vector<8x126xf32>, vector<8x2xf32> -> vector<8x128xf32>
    %c2_i32 = arith.constant 2 : i32
    %151 = vector.broadcast %c2_i32 : i32 to vector<8x128xi32>
    %152 = arith.addi %42, %151 : vector<8x128xi32>
    %c0_i32_54 = arith.constant 0 : i32
    %153 = vector.broadcast %c0_i32_54 : i32 to vector<8x128xi32>
    %154 = arith.cmpi sge, %152, %153 : vector<8x128xi32>
    %c64_i32_55 = arith.constant 64 : i32
    %155 = vector.broadcast %c64_i32_55 : i32 to vector<8x128xi32>
    %156 = arith.cmpi slt, %152, %155 : vector<8x128xi32>
    %157 = arith.andi %154, %156 : vector<8x128xi1>
    %cst_56 = arith.constant 0.000000e+00 : f32
    %158 = vector.broadcast %cst_56 : f32 to vector<8x128xf32>
    %159 = arith.select %157, %150, %158 : vector<8x128xi1>, vector<8x128xf32>
    %160 = vector.extract_strided_slice %25 {offsets = [0, 3], sizes = [8, 125], strides = [1, 1]} : vector<8x128xf32> to vector<8x125xf32>
    %cst_57 = arith.constant 0.000000e+00 : f32
    %161 = vector.broadcast %cst_57 : f32 to vector<8x3xf32>
    %162 = tpu.concatenate %160, %161 in 1 : vector<8x125xf32>, vector<8x3xf32> -> vector<8x128xf32>
    %c3_i32 = arith.constant 3 : i32
    %163 = vector.broadcast %c3_i32 : i32 to vector<8x128xi32>
    %164 = arith.addi %42, %163 : vector<8x128xi32>
    %c0_i32_58 = arith.constant 0 : i32
    %165 = vector.broadcast %c0_i32_58 : i32 to vector<8x128xi32>
    %166 = arith.cmpi sge, %164, %165 : vector<8x128xi32>
    %c64_i32_59 = arith.constant 64 : i32
    %167 = vector.broadcast %c64_i32_59 : i32 to vector<8x128xi32>
    %168 = arith.cmpi slt, %164, %167 : vector<8x128xi32>
    %169 = arith.andi %166, %168 : vector<8x128xi1>
    %cst_60 = arith.constant 0.000000e+00 : f32
    %170 = vector.broadcast %cst_60 : f32 to vector<8x128xf32>
    %171 = arith.select %169, %162, %170 : vector<8x128xi1>, vector<8x128xf32>
    %172 = vector.extract_strided_slice %25 {offsets = [0, 4], sizes = [8, 124], strides = [1, 1]} : vector<8x128xf32> to vector<8x124xf32>
    %cst_61 = arith.constant 0.000000e+00 : f32
    %173 = vector.broadcast %cst_61 : f32 to vector<8x4xf32>
    %174 = tpu.concatenate %172, %173 in 1 : vector<8x124xf32>, vector<8x4xf32> -> vector<8x128xf32>
    %c4_i32 = arith.constant 4 : i32
    %175 = vector.broadcast %c4_i32 : i32 to vector<8x128xi32>
    %176 = arith.addi %42, %175 : vector<8x128xi32>
    %c0_i32_62 = arith.constant 0 : i32
    %177 = vector.broadcast %c0_i32_62 : i32 to vector<8x128xi32>
    %178 = arith.cmpi sge, %176, %177 : vector<8x128xi32>
    %c64_i32_63 = arith.constant 64 : i32
    %179 = vector.broadcast %c64_i32_63 : i32 to vector<8x128xi32>
    %180 = arith.cmpi slt, %176, %179 : vector<8x128xi32>
    %181 = arith.andi %178, %180 : vector<8x128xi1>
    %cst_64 = arith.constant 0.000000e+00 : f32
    %182 = vector.broadcast %cst_64 : f32 to vector<8x128xf32>
    %183 = arith.select %181, %174, %182 : vector<8x128xi1>, vector<8x128xf32>
    %184 = vector.extract_strided_slice %25 {offsets = [0, 5], sizes = [8, 123], strides = [1, 1]} : vector<8x128xf32> to vector<8x123xf32>
    %cst_65 = arith.constant 0.000000e+00 : f32
    %185 = vector.broadcast %cst_65 : f32 to vector<8x5xf32>
    %186 = tpu.concatenate %184, %185 in 1 : vector<8x123xf32>, vector<8x5xf32> -> vector<8x128xf32>
    %c5_i32 = arith.constant 5 : i32
    %187 = vector.broadcast %c5_i32 : i32 to vector<8x128xi32>
    %188 = arith.addi %42, %187 : vector<8x128xi32>
    %c0_i32_66 = arith.constant 0 : i32
    %189 = vector.broadcast %c0_i32_66 : i32 to vector<8x128xi32>
    %190 = arith.cmpi sge, %188, %189 : vector<8x128xi32>
    %c64_i32_67 = arith.constant 64 : i32
    %191 = vector.broadcast %c64_i32_67 : i32 to vector<8x128xi32>
    %192 = arith.cmpi slt, %188, %191 : vector<8x128xi32>
    %193 = arith.andi %190, %192 : vector<8x128xi1>
    %cst_68 = arith.constant 0.000000e+00 : f32
    %194 = vector.broadcast %cst_68 : f32 to vector<8x128xf32>
    %195 = arith.select %193, %186, %194 : vector<8x128xi1>, vector<8x128xf32>
    %196 = vector.extract_strided_slice %25 {offsets = [0, 6], sizes = [8, 122], strides = [1, 1]} : vector<8x128xf32> to vector<8x122xf32>
    %cst_69 = arith.constant 0.000000e+00 : f32
    %197 = vector.broadcast %cst_69 : f32 to vector<8x6xf32>
    %198 = tpu.concatenate %196, %197 in 1 : vector<8x122xf32>, vector<8x6xf32> -> vector<8x128xf32>
    %c6_i32 = arith.constant 6 : i32
    %199 = vector.broadcast %c6_i32 : i32 to vector<8x128xi32>
    %200 = arith.addi %42, %199 : vector<8x128xi32>
    %c0_i32_70 = arith.constant 0 : i32
    %201 = vector.broadcast %c0_i32_70 : i32 to vector<8x128xi32>
    %202 = arith.cmpi sge, %200, %201 : vector<8x128xi32>
    %c64_i32_71 = arith.constant 64 : i32
    %203 = vector.broadcast %c64_i32_71 : i32 to vector<8x128xi32>
    %204 = arith.cmpi slt, %200, %203 : vector<8x128xi32>
    %205 = arith.andi %202, %204 : vector<8x128xi1>
    %cst_72 = arith.constant 0.000000e+00 : f32
    %206 = vector.broadcast %cst_72 : f32 to vector<8x128xf32>
    %207 = arith.select %205, %198, %206 : vector<8x128xi1>, vector<8x128xf32>
    %208 = vector.extract_strided_slice %25 {offsets = [0, 7], sizes = [8, 121], strides = [1, 1]} : vector<8x128xf32> to vector<8x121xf32>
    %cst_73 = arith.constant 0.000000e+00 : f32
    %209 = vector.broadcast %cst_73 : f32 to vector<8x7xf32>
    %210 = tpu.concatenate %208, %209 in 1 : vector<8x121xf32>, vector<8x7xf32> -> vector<8x128xf32>
    %c7_i32 = arith.constant 7 : i32
    %211 = vector.broadcast %c7_i32 : i32 to vector<8x128xi32>
    %212 = arith.addi %42, %211 : vector<8x128xi32>
    %c0_i32_74 = arith.constant 0 : i32
    %213 = vector.broadcast %c0_i32_74 : i32 to vector<8x128xi32>
    %214 = arith.cmpi sge, %212, %213 : vector<8x128xi32>
    %c64_i32_75 = arith.constant 64 : i32
    %215 = vector.broadcast %c64_i32_75 : i32 to vector<8x128xi32>
    %216 = arith.cmpi slt, %212, %215 : vector<8x128xi32>
    %217 = arith.andi %214, %216 : vector<8x128xi1>
    %cst_76 = arith.constant 0.000000e+00 : f32
    %218 = vector.broadcast %cst_76 : f32 to vector<8x128xf32>
    %219 = arith.select %217, %210, %218 : vector<8x128xi1>, vector<8x128xf32>
    %cst_77 = arith.constant 0.000000e+00 : f32
    %220 = vector.broadcast %cst_77 : f32 to vector<8x128xf32>
    %221 = tpu.concatenate %54, %66, %78, %90, %102, %114, %126, %135, %147, %159, %171, %183, %195, %207, %219, %220 in 0 : vector<8x128xf32>, vector<8x128xf32>, vector<8x128xf32>, vector<8x128xf32>, vector<8x128xf32>, vector<8x128xf32>, vector<8x128xf32>, vector<8x128xf32>, vector<8x128xf32>, vector<8x128xf32>, vector<8x128xf32>, vector<8x128xf32>, vector<8x128xf32>, vector<8x128xf32>, vector<8x128xf32>, vector<8x128xf32> -> vector<128x128xf32>
    %222 = arith.truncf %221 : vector<128x128xf32> to vector<128x128xbf16>
    %c0_78 = arith.constant 0 : index
    %c0_79 = arith.constant 0 : index
    %223 = vector.load %arg2[%c0_78, %c0_79] : memref<8x128xbf16, #tpu.memory_space<vmem>>, vector<8x128xbf16>
    %cst_80 = arith.constant dense<0.000000e+00> : vector<8x128xf32>
    %224 = tpu.matmul %223, %222, %cst_80 {dimension_numbers = #tpu.dot_dimension_numbers<[1], [0], [0], [1], [0, 0, 1, 1], [], []>} : vector<8x128xbf16>, vector<128x128xbf16>, vector<8x128xf32> -> vector<8x128xf32>
    %cst_81 = arith.constant dense<0.000000e+00> : vector<8xf32>
    %225 = vector.multi_reduction <add>, %224, %cst_81 [1] : vector<8x128xf32> to vector<8xf32>
    %226 = vector.shape_cast %225 : vector<8xf32> to vector<8x1xf32>
    %cst_82 = arith.constant 7.812500e-03 : f32
    %227 = vector.broadcast %cst_82 : f32 to vector<8x1xf32>
    %228 = arith.mulf %226, %227 : vector<8x1xf32>
    %229 = vector.broadcast %228 : vector<8x1xf32> to vector<8x128xf32>
    %230 = arith.subf %224, %229 : vector<8x128xf32>
    %231 = arith.mulf %230, %230 : vector<8x128xf32>
    %cst_83 = arith.constant dense<0.000000e+00> : vector<8xf32>
    %232 = vector.multi_reduction <add>, %231, %cst_83 [1] : vector<8x128xf32> to vector<8xf32>
    %233 = vector.shape_cast %232 : vector<8xf32> to vector<8x1xf32>
    %cst_84 = arith.constant 7.812500e-03 : f32
    %234 = vector.broadcast %cst_84 : f32 to vector<8x1xf32>
    %235 = arith.mulf %233, %234 : vector<8x1xf32>
    %cst_85 = arith.constant 9.99999974E-6 : f32
    %236 = vector.broadcast %cst_85 : f32 to vector<8x1xf32>
    %237 = arith.addf %235, %236 : vector<8x1xf32>
    %238 = math.rsqrt %237 : vector<8x1xf32>
    %c0_86 = arith.constant 0 : index
    %c0_87 = arith.constant 0 : index
    %239 = vector.load %arg5[%c0_86, %c0_87] : memref<8x1xf32, #tpu.memory_space<vmem>>, vector<8x1xf32>
    %240 = arith.mulf %238, %239 : vector<8x1xf32>
    %241 = vector.broadcast %240 : vector<8x1xf32> to vector<8x128xf32>
    %242 = arith.mulf %230, %241 : vector<8x128xf32>
    %c0_88 = arith.constant 0 : index
    %c0_89 = arith.constant 0 : index
    %243 = vector.load %arg6[%c0_88, %c0_89] : memref<8x1xf32, #tpu.memory_space<vmem>>, vector<8x1xf32>
    %244 = vector.broadcast %243 : vector<8x1xf32> to vector<8x128xf32>
    %245 = arith.addf %242, %244 : vector<8x128xf32>
    %c0_90 = arith.constant 0 : index
    %c0_91 = arith.constant 0 : index
    %246 = vector.load %arg7[%c0_90, %c0_91] : memref<8x128xf32, #tpu.memory_space<vmem>>, vector<8x128xf32>
    %247 = arith.addf %245, %246 : vector<8x128xf32>
    %cst_92 = arith.constant 0.000000e+00 : f32
    %248 = vector.broadcast %cst_92 : f32 to vector<8x128xf32>
    %249 = arith.maximumf %247, %248 : vector<8x128xf32>
    %c0_93 = arith.constant 0 : index
    %c0_94 = arith.constant 0 : index
    %250 = vector.load %arg8[%c0_93, %c0_94] : memref<8x128xf32, #tpu.memory_space<vmem>>, vector<8x128xf32>
    tpu.vector_store %arg8[%c0_93, %c0_94], %249 {strides = array<i32>} : memref<8x128xf32, #tpu.memory_space<vmem>>, vector<8x128xf32>,
    return
  }
}

</mosaic_0001>

<llo_original>
// kernel: basic_block_forward.1
$region0: #{basic_block_forward.1}
  #allocation0 [shape = 'u32[]', space=smem, size = 0x4, offset = 0x4, fixed_abs, tag = 'smem constant byte address 0x4 - core index']
  #allocation1 [shape = 'u32[144,128]{1,0:T(1,128)}', space=vmem, size = 0x12000, scoped, tag = 'internal scratch']
  %s0 = inlined_call_operand.vmem [shape: bf16[128,128], index: 0, kind: input, shape index: {}]
  %s1 = inlined_call_operand.vmem [shape: bf16[8,128], index: 1, kind: input, shape index: {}]
  %s2 = inlined_call_operand.vmem [shape: bf16[8,128], index: 2, kind: input, shape index: {}]
  %s3 = inlined_call_operand.vmem [shape: f32[8,1], index: 3, kind: input, shape index: {}]
  %s4 = inlined_call_operand.vmem [shape: f32[8,1], index: 4, kind: input, shape index: {}]
  %s5 = inlined_call_operand.vmem [shape: f32[8,1], index: 5, kind: input, shape index: {}]
  %s6 = inlined_call_operand.vmem [shape: f32[8,1], index: 6, kind: input, shape index: {}]
  %s7 = inlined_call_operand.vmem [shape: f32[8,128], index: 7, kind: input, shape index: {}]
  %s8 = inlined_call_operand.vmem [shape: f32[8,128], index: 8, kind: output, shape index: {}]
  %s9 = sld [smem:[#allocation0]]
  $region42: #{basic_block_forward.1} parent=0
    _
  %s11 = ssub.s32 1, %s9
  %s12 = scalar_select 0, %s11, %s9
  // Predicated region
  $region2: #{basic_block_forward.1} parent=0 // pred_check
    _
  $region3: #{basic_block_forward.1} parent=0 // pred_check_branch
    %14 = sbr.rel (0) target = $region5
  $region4: #{basic_block_forward.1} parent=0 // pred_region
    _
  $region5: #{basic_block_forward.1} parent=0 // pred_fallthru
    _
  // Predicated region
  $region6: #{basic_block_forward.1} parent=0 // pred_check
    _
  $region7: #{basic_block_forward.1} parent=0 // pred_check_branch
    %16 = sbr.rel (0) target = $region9
  $region8: #{basic_block_forward.1} parent=0 // pred_region
    _
  $region9: #{basic_block_forward.1} parent=0 // pred_fallthru
    _
  // Predicated region
  $region10: #{basic_block_forward.1} parent=0 // pred_check
    _
  $region11: #{basic_block_forward.1} parent=0 // pred_check_branch
    %18 = sbr.rel (0) target = $region13
  $region12: #{basic_block_forward.1} parent=0 // pred_region
    _
  $region13: #{basic_block_forward.1} parent=0 // pred_fallthru
    _
  // Predicated region
  $region14: #{basic_block_forward.1} parent=0 // pred_check
    _
  $region15: #{basic_block_forward.1} parent=0 // pred_check_branch
    %20 = sbr.rel (0) target = $region17
  $region16: #{basic_block_forward.1} parent=0 // pred_region
    _
  $region17: #{basic_block_forward.1} parent=0 // pred_fallthru
    _
  // Predicated region
  $region18: #{basic_block_forward.1} parent=0 // pred_check
    _
  $region19: #{basic_block_forward.1} parent=0 // pred_check_branch
    %22 = sbr.rel (0) target = $region21
  $region20: #{basic_block_forward.1} parent=0 // pred_region
    _
  $region21: #{basic_block_forward.1} parent=0 // pred_fallthru
    _
  // Predicated region
  $region22: #{basic_block_forward.1} parent=0 // pred_check
    _
  $region23: #{basic_block_forward.1} parent=0 // pred_check_branch
    %24 = sbr.rel (0) target = $region25
  $region24: #{basic_block_forward.1} parent=0 // pred_region
    _
  $region25: #{basic_block_forward.1} parent=0 // pred_fallthru
    _
  // Predicated region
  $region26: #{basic_block_forward.1} parent=0 // pred_check
    _
  $region27: #{basic_block_forward.1} parent=0 // pred_check_branch
    %26 = sbr.rel (0) target = $region29
  $region28: #{basic_block_forward.1} parent=0 // pred_region
    _
  $region29: #{basic_block_forward.1} parent=0 // pred_fallthru
    _
  // Predicated region
  $region30: #{basic_block_forward.1} parent=0 // pred_check
    _
  $region31: #{basic_block_forward.1} parent=0 // pred_check_branch
    %28 = sbr.rel (0) target = $region33
  $region32: #{basic_block_forward.1} parent=0 // pred_region
    _
  $region33: #{basic_block_forward.1} parent=0 // pred_fallthru
    _
  %v30 = vld [vmem:[%s1] sm:$0xf]
  %v31 = vld [vmem:[%s0] sm:$0xf]
  %v32 = vld [vmem:[%s0 + $0x4] sm:$0xf]
  %v33 = vld [vmem:[%s0 + $0x8] sm:$0xf]
  %v34 = vld [vmem:[%s0 + $0xc] sm:$0xf]
  %v35 = vld [vmem:[%s0 + $0x10] sm:$0xf]
  %v36 = vld [vmem:[%s0 + $0x14] sm:$0xf]
  %v37 = vld [vmem:[%s0 + $0x18] sm:$0xf]
  %v38 = vld [vmem:[%s0 + $0x1c] sm:$0xf]
  %v39 = vld [vmem:[%s0 + $0x20] sm:$0xf]
  %v40 = vld [vmem:[%s0 + $0x24] sm:$0xf]
  %v41 = vld [vmem:[%s0 + $0x28] sm:$0xf]
  %v42 = vld [vmem:[%s0 + $0x2c] sm:$0xf]
  %v43 = vld [vmem:[%s0 + $0x30] sm:$0xf]
  %v44 = vld [vmem:[%s0 + $0x34] sm:$0xf]
  %v45 = vld [vmem:[%s0 + $0x38] sm:$0xf]
  %v46 = vld [vmem:[%s0 + $0x3c] sm:$0xf]
  %v63 = vunpack.c.l.b16 %v31
  %v64 = vunpack.c.l.b16 %v32
  %v65 = vunpack.c.l.b16 %v33
  %v66 = vunpack.c.l.b16 %v34
  %v67 = vunpack.c.l.b16 %v35
  %v68 = vunpack.c.l.b16 %v36
  %v69 = vunpack.c.l.b16 %v37
  %v70 = vunpack.c.l.b16 %v38
  %v71 = vunpack.c.l.b16 %v39
  %v72 = vunpack.c.l.b16 %v40
  %v73 = vunpack.c.l.b16 %v41
  %v74 = vunpack.c.l.b16 %v42
  %v75 = vunpack.c.l.b16 %v43
  %v76 = vunpack.c.l.b16 %v44
  %v77 = vunpack.c.l.b16 %v45
  %v78 = vunpack.c.l.b16 %v46
  %v79 = vpack.c.b16 %v64, %v63
  %v80 = vpack.c.b16 %v66, %v65
  %v81 = vpack.c.b16 %v68, %v67
  %v82 = vpack.c.b16 %v70, %v69
  %v83 = vpack.c.b16 %v72, %v71
  %v84 = vpack.c.b16 %v74, %v73
  %v85 = vpack.c.b16 %v76, %v75
  %v86 = vpack.c.b16 %v78, %v77
  %95 = vmatprep.subr.bf16.mxu0 0
  %96 = vmatpush1.bf16.msra.mxu0 %v79
  %97 = vmatprep.subr.bf16.mxu0 0
  %98 = vmatpush1.bf16.msra.mxu0 %v80
  %99 = vmatprep.subr.bf16.mxu0 0
  %100 = vmatpush1.bf16.msra.mxu0 %v81
  %101 = vmatprep.subr.bf16.mxu0 0
  %102 = vmatpush1.bf16.msra.mxu0 %v82
  %103 = vmatprep.subr.bf16.mxu0 0
  %104 = vmatpush1.bf16.msra.mxu0 %v83
  %105 = vmatprep.subr.bf16.mxu0 0
  %106 = vmatpush1.bf16.msra.mxu0 %v84
  %107 = vmatprep.subr.bf16.mxu0 0
  %108 = vmatpush1.bf16.msra.mxu0 %v85
  %109 = vmatprep.subr.bf16.mxu0 0
  %110 = vmatpush1.bf16.msra.mxu0 %v86
  %111 = vmatprep.subr.bf16.mxu0 0
  %112 = vmatpush1.bf16.msra.mxu0 0
  %113 = vmatprep.subr.bf16.mxu0 0
  %114 = vmatpush1.bf16.msra.mxu0 0
  %115 = vmatprep.subr.bf16.mxu0 0
  %116 = vmatpush1.bf16.msra.mxu0 0
  %117 = vmatprep.subr.bf16.mxu0 0
  %118 = vmatpush1.bf16.msra.mxu0 0
  %119 = vmatprep.subr.bf16.mxu0 0
  %120 = vmatpush1.bf16.msra.mxu0 0
  %121 = vmatprep.subr.bf16.mxu0 0
  %122 = vmatpush1.bf16.msra.mxu0 0
  %123 = vmatprep.subr.bf16.mxu0 0
  %124 = vmatpush1.bf16.msra.mxu0 0
  %125 = vmatprep.subr.bf16.mxu0 0
  %126 = vmatpush1.bf16.msra.mxu0 0
  %127 = vmatprep.mubr.bf16.mxu0 0
  %128 = vmatmul.mubr.bf16.gmra.mrb[0].mxu0 %v30
  %v129 = vpop.f32.mrb[0].mxu0
  %v130 = vadd.f32 0.0, %v129
  %v131 = vpop.f32.mrb[0].mxu0
  %v132 = vpop.f32.mrb[0].mxu0
  %v133 = vpop.f32.mrb[0].mxu0
  %134 = vdwg.mxu0
  %135 = vadd.xlane.f32.xlu0 %v130
  %v136 = vpop.xlane.xlu0 %135
  %v137 = vmul.f32 %v136, 0.0078125
  %v138 = vsub.f32 %v130, %v137
  %v139 = vmul.f32 %v138, %v138
  %140 = vadd.xlane.f32.xlu0 %v139
  %v141 = vpop.xlane.xlu0 %140
  %v142 = vmul.f32 %v141, 0.0078125
  %v143 = vadd.f32 %v142, 1e-05
  %v144 = vrsqrt.pop %v143
  %v145 = vld [vmem:[%s3] sm:$0xff]
  %v146 = vmul.f32 %v144, %v145
  %148 = vset.pattern.permute.xlu0 0
  %149 = vperm.xlu0 %148, %v146
  %v150 = vpop.permute.xlu0 %149
  %v152 = vmul.f32 %v138, %v150
  %v153 = vld [vmem:[%s4] sm:$0xff]
  %155 = vset.pattern.permute.xlu0 0
  %156 = vperm.xlu0 %155, %v153
  %v157 = vpop.permute.xlu0 %156
  %v159 = vadd.f32 %v152, %v157
  %v160 = vmax.f32 %v159, 0.0
  %v161 = vlaneseq
  %v162 = vand.u32 %v161, 127
  %vm163 = vcmp.lt.s32.totalorder %v162, 0
  %v164 = vsub.s32 0, %v162
  %v165 = vsel %vm163, %v164, %v162
  %v166 = vshrl.u32 %v165, 6
  %v167 = vand.u32 %v165, 63
  %v168 = vsub.s32 0, %v167
  %v169 = vsel %vm163, %v168, %v167
  %vm170 = vcmp.ne.s32.totalorder %v169, 0
  %vm171 = vcmp.lt.s32.totalorder %v169, 0
  %vm172 = vmand %vm171, %vm170
  %v173 = vadd.s32 %v169, 64
  %v174 = vsel %vm172, %v173, %v169
  %176 = vrot.lane.b32.xlu0 %v160, 7
  %v177 = vpop.permute.xlu0 %176
  %vm179 = vcmask 56320
  %v180 = vsel %vm179, 0.0, %v177
  %v181 = vadd.s32 %v174, 4294967289
  %vm182 = vcmp.ge.s32.totalorder %v181, 0
  %vm183 = vcmp.lt.s32.totalorder %v181, 64
  %vm184 = vmand %vm182, %vm183
  %v185 = vsel %vm184, %v180, 0.0
  %186 = vrot.lane.b32.xlu0 %v160, 6
  %v187 = vpop.permute.xlu0 %186
  %vm189 = vcmask 48128
  %v190 = vsel %vm189, 0.0, %v187
  %v191 = vadd.s32 %v174, 4294967290
  %vm192 = vcmp.ge.s32.totalorder %v191, 0
  %vm193 = vcmp.lt.s32.totalorder %v191, 64
  %vm194 = vmand %vm192, %vm193
  %v195 = vsel %vm194, %v190, 0.0
  %196 = vrot.lane.b32.xlu0 %v160, 5
  %v197 = vpop.permute.xlu0 %196
  %vm199 = vcmask 39936
  %v200 = vsel %vm199, 0.0, %v197
  %v201 = vadd.s32 %v174, 4294967291
  %vm202 = vcmp.ge.s32.totalorder %v201, 0
  %vm203 = vcmp.lt.s32.totalorder %v201, 64
  %vm204 = vmand %vm202, %vm203
  %v205 = vsel %vm204, %v200, 0.0
  %206 = vrot.lane.b32.xlu0 %v160, 4
  %v207 = vpop.permute.xlu0 %206
  %vm209 = vcmask 31744
  %v210 = vsel %vm209, 0.0, %v207
  %v211 = vadd.s32 %v174, 4294967292
  %vm212 = vcmp.ge.s32.totalorder %v211, 0
  %vm213 = vcmp.lt.s32.totalorder %v211, 64
  %vm214 = vmand %vm212, %vm213
  %v215 = vsel %vm214, %v210, 0.0
  %216 = vrot.lane.b32.xlu0 %v160, 3
  %v217 = vpop.permute.xlu0 %216
  %vm219 = vcmask 23552
  %v220 = vsel %vm219, 0.0, %v217
  %v221 = vadd.s32 %v174, 4294967293
  %vm222 = vcmp.ge.s32.totalorder %v221, 0
  %vm223 = vcmp.lt.s32.totalorder %v221, 64
  %vm224 = vmand %vm222, %vm223
  %v225 = vsel %vm224, %v220, 0.0
  %226 = vrot.lane.b32.xlu0 %v160, 2
  %v227 = vpop.permute.xlu0 %226
  %vm229 = vcmask 15360
  %v230 = vsel %vm229, 0.0, %v227
  %v231 = vadd.s32 %v174, 4294967294
  %vm232 = vcmp.ge.s32.totalorder %v231, 0
  %vm233 = vcmp.lt.s32.totalorder %v231, 64
  %vm234 = vmand %vm232, %vm233
  %v235 = vsel %vm234, %v230, 0.0
  %236 = vrot.lane.b32.xlu0 %v160, 1
  %v237 = vpop.permute.xlu0 %236
  %vm239 = vcmask 7168
  %v240 = vsel %vm239, 0.0, %v237
  %v241 = vadd.s32 %v174, 4294967295
  %vm242 = vcmp.ge.s32.totalorder %v241, 0
  %vm243 = vcmp.lt.s32.totalorder %v241, 64
  %vm244 = vmand %vm242, %vm243
  %v245 = vsel %vm244, %v240, 0.0
  %vm246 = vcmp.ge.s32.totalorder %v174, 0
  %vm247 = vcmp.lt.s32.totalorder %v174, 64
  %vm248 = vmand %vm246, %vm247
  %v249 = vsel %vm248, %v160, 0.0
  %250 = vrot.lane.b32.xlu0 %v160, 127
  %v251 = vpop.permute.xlu0 %250
  %vm253 = vcmask 1039360
  %v254 = vsel %vm253, %v251, 0.0
  %v255 = vadd.s32 %v174, 1
  %vm256 = vcmp.ge.s32.totalorder %v255, 0
  %vm257 = vcmp.lt.s32.totalorder %v255, 64
  %vm258 = vmand %vm256, %vm257
  %v259 = vsel %vm258, %v254, 0.0
  %260 = vrot.lane.b32.xlu0 %v160, 126
  %v261 = vpop.permute.xlu0 %260
  %vm263 = vcmask 1031168
  %v264 = vsel %vm263, %v261, 0.0
  %v265 = vadd.s32 %v174, 2
  %vm266 = vcmp.ge.s32.totalorder %v265, 0
  %vm267 = vcmp.lt.s32.totalorder %v265, 64
  %vm268 = vmand %vm266, %vm267
  %v269 = vsel %vm268, %v264, 0.0
  %270 = vrot.lane.b32.xlu0 %v160, 125
  %v271 = vpop.permute.xlu0 %270
  %vm273 = vcmask 1022976
  %v274 = vsel %vm273, %v271, 0.0
  %v275 = vadd.s32 %v174, 3
  %vm276 = vcmp.ge.s32.totalorder %v275, 0
  %vm277 = vcmp.lt.s32.totalorder %v275, 64
  %vm278 = vmand %vm276, %vm277
  %v279 = vsel %vm278, %v274, 0.0
  %280 = vrot.lane.b32.xlu0 %v160, 124
  %v281 = vpop.permute.xlu0 %280
  %vm283 = vcmask 1014784
  %v284 = vsel %vm283, %v281, 0.0
  %v285 = vadd.s32 %v174, 4
  %vm286 = vcmp.ge.s32.totalorder %v285, 0
  %vm287 = vcmp.lt.s32.totalorder %v285, 64
  %vm288 = vmand %vm286, %vm287
  %v289 = vsel %vm288, %v284, 0.0
  %290 = vrot.lane.b32.xlu0 %v160, 123
  %v291 = vpop.permute.xlu0 %290
  %vm293 = vcmask 1006592
  %v294 = vsel %vm293, %v291, 0.0
  %v295 = vadd.s32 %v174, 5
  %vm296 = vcmp.ge.s32.totalorder %v295, 0
  %vm297 = vcmp.lt.s32.totalorder %v295, 64
  %vm298 = vmand %vm296, %vm297
  %v299 = vsel %vm298, %v294, 0.0
  %300 = vrot.lane.b32.xlu0 %v160, 122
  %v301 = vpop.permute.xlu0 %300
  %vm303 = vcmask 998400
  %v304 = vsel %vm303, %v301, 0.0
  %v305 = vadd.s32 %v174, 6
  %vm306 = vcmp.ge.s32.totalorder %v305, 0
  %vm307 = vcmp.lt.s32.totalorder %v305, 64
  %vm308 = vmand %vm306, %vm307
  %v309 = vsel %vm308, %v304, 0.0
  %310 = vrot.lane.b32.xlu0 %v160, 121
  %v311 = vpop.permute.xlu0 %310
  %vm313 = vcmask 990208
  %v314 = vsel %vm313, %v311, 0.0
  %v315 = vadd.s32 %v174, 7
  %vm316 = vcmp.ge.s32.totalorder %v315, 0
  %vm317 = vcmp.lt.s32.totalorder %v315, 64
  %vm318 = vmand %vm316, %vm317
  %v319 = vsel %vm318, %v314, 0.0
  %v320 = vpack.c.bf16 %v195, %v185
  %v321 = vpack.c.bf16 %v215, %v205
  %v322 = vpack.c.bf16 %v235, %v225
  %v323 = vpack.c.bf16 %v249, %v245
  %v324 = vpack.c.bf16 %v269, %v259
  %v325 = vpack.c.bf16 %v289, %v279
  %v326 = vpack.c.bf16 %v309, %v299
  %v327 = vpack.c.bf16 0.0, %v319
  %v328 = vld [vmem:[%s2] sm:$0xf]
  %329 = vmatprep.subr.bf16.mxu0 0
  %330 = vmatpush1.bf16.msra.mxu0 %v320
  %331 = vmatprep.subr.bf16.mxu0 0
  %332 = vmatpush1.bf16.msra.mxu0 %v321
  %333 = vmatprep.subr.bf16.mxu0 0
  %334 = vmatpush1.bf16.msra.mxu0 %v322
  %335 = vmatprep.subr.bf16.mxu0 0
  %336 = vmatpush1.bf16.msra.mxu0 %v323
  %337 = vmatprep.subr.bf16.mxu0 0
  %338 = vmatpush1.bf16.msra.mxu0 %v324
  %339 = vmatprep.subr.bf16.mxu0 0
  %340 = vmatpush1.bf16.msra.mxu0 %v325
  %341 = vmatprep.subr.bf16.mxu0 0
  %342 = vmatpush1.bf16.msra.mxu0 %v326
  %343 = vmatprep.subr.bf16.mxu0 0
  %344 = vmatpush1.bf16.msra.mxu0 %v327
  %345 = vmatprep.subr.bf16.mxu0 0
  %346 = vmatpush1.bf16.msra.mxu0 0
  %347 = vmatprep.subr.bf16.mxu0 0
  %348 = vmatpush1.bf16.msra.mxu0 0
  %349 = vmatprep.subr.bf16.mxu0 0
  %350 = vmatpush1.bf16.msra.mxu0 0
  %351 = vmatprep.subr.bf16.mxu0 0
  %352 = vmatpush1.bf16.msra.mxu0 0
  %353 = vmatprep.subr.bf16.mxu0 0
  %354 = vmatpush1.bf16.msra.mxu0 0
  %355 = vmatprep.subr.bf16.mxu0 0
  %356 = vmatpush1.bf16.msra.mxu0 0
  %357 = vmatprep.subr.bf16.mxu0 0
  %358 = vmatpush1.bf16.msra.mxu0 0
  %359 = vmatprep.subr.bf16.mxu0 0
  %360 = vmatpush1.bf16.msra.mxu0 0
  %361 = vmatprep.mubr.bf16.mxu0 0
  %362 = vmatmul.mubr.bf16.gmra.mrb[0].mxu0 %v328
  %v363 = vpop.f32.mrb[0].mxu0
  %v364 = vadd.f32 0.0, %v363
  %v365 = vpop.f32.mrb[0].mxu0
  %v366 = vpop.f32.mrb[0].mxu0
  %v367 = vpop.f32.mrb[0].mxu0
  %368 = vdwg.mxu0
  %369 = vadd.xlane.f32.xlu0 %v364
  %v370 = vpop.xlane.xlu0 %369
  %v371 = vmul.f32 %v370, 0.0078125
  %v372 = vsub.f32 %v364, %v371
  %v373 = vmul.f32 %v372, %v372
  %374 = vadd.xlane.f32.xlu0 %v373
  %v375 = vpop.xlane.xlu0 %374
  %v376 = vmul.f32 %v375, 0.0078125
  %v377 = vadd.f32 %v376, 1e-05
  %v378 = vrsqrt.pop %v377
  %v379 = vld [vmem:[%s5] sm:$0xff]
  %v380 = vmul.f32 %v378, %v379
  %382 = vset.pattern.permute.xlu0 0
  %383 = vperm.xlu0 %382, %v380
  %v384 = vpop.permute.xlu0 %383
  %v386 = vmul.f32 %v372, %v384
  %v387 = vld [vmem:[%s6] sm:$0xff]
  %389 = vset.pattern.permute.xlu0 0
  %390 = vperm.xlu0 %389, %v387
  %v391 = vpop.permute.xlu0 %390
  %v393 = vadd.f32 %v386, %v391
  %v394 = vld [vmem:[%s7] sm:$0xff]
  %v395 = vadd.f32 %v393, %v394
  %v396 = vmax.f32 %v395, 0.0
  %397 = vst [vmem:[%s8] sm:$0xff] %v396
  // Predicated region
  $region34: #{basic_block_forward.1} parent=0 // pred_check
    _
  $region35: #{basic_block_forward.1} parent=0 // pred_check_branch
    %399 = sbr.rel (0) target = $region37
  $region36: #{basic_block_forward.1} parent=0 // pred_region
    _
  $region37: #{basic_block_forward.1} parent=0 // pred_fallthru
    _
  // Predicated region
  $region38: #{basic_block_forward.1} parent=0 // pred_check
    _
  $region39: #{basic_block_forward.1} parent=0 // pred_check_branch
    %401 = sbr.rel (0) target = $region41
  $region40: #{basic_block_forward.1} parent=0 // pred_region
    _
  $region41: #{basic_block_forward.1} parent=0 // pred_fallthru
    _

</llo_original>
